<compile_context>
chip_gen: v7x
topology: tpu7x:2x2x1
jax: 0.10.0
libtpu: 0.0.40
codegen_flags: <defaults>
</compile_context>

<pallas_src>
import jax
import jax.numpy as jnp
from jax import lax
from jax.experimental import pallas as pl
from jax.experimental.pallas import tpu as pltpu


def _round_up(x, m):
    return ((x + m - 1) // m) * m


def _make_attacker_kernel(num_layers):
    """One batch tile: fused embedding-bag pooling (hidden extraction) + DomainAdv MLP."""

    def kernel(tok_ref, wpool_ref, table_ref, *refs):
        # refs = (w_0, b_0, ..., w_{L-1}, b_{L-1}, out_ref)
        out_ref = refs[-1]

        tok = tok_ref[...]                           # (TB, S) int32 token ids
        wp = wpool_ref[...]                          # (TB, S) f32, mask & 1/len folded in
        tb, s = tok.shape
        vp = table_ref.shape[0]

        # Bag-of-words weights: A[b, v] = sum_s wp[b, s] * [tok[b, s] == v]
        vocab_iota = lax.broadcasted_iota(jnp.int32, (tb, s, vp), 2)
        onehot_w = jnp.where(tok[:, :, None] == vocab_iota, wp[:, :, None],
                             jnp.float32(0.0))        # (TB, S, Vp)
        a = jnp.sum(onehot_w, axis=1)                 # (TB, Vp)

        # hidden[b, :] = sum_s wp[b, s] * emb_table[tok[b, s], :]  -- one MXU matmul
        x = jnp.dot(a, table_ref[...], preferred_element_type=jnp.float32)   # (TB, E)

        # DomainAdv: linear stack, relu on all but the last layer (dropout unused in fwd).
        for l in range(num_layers):
            w = refs[2 * l][...]
            b = refs[2 * l + 1][...]
            x = jnp.dot(x, w, preferred_element_type=jnp.float32) + b
            if l != num_layers - 1:
                x = jnp.maximum(x, 0.0)

        out_ref[...] = x                              # (TB, Op) lane-dense store

    return kernel


def attacker_forward(text, lengths, params, *, vmem_tile_budget_bytes=8 * 1024 * 1024):
    """text: (seq, batch) int32 token ids; lengths: (batch,) int32 -> (batch, output_dim)."""
    emb_table = params["embedding"]                   # (vocab, E) with E = 2 * hid_dim
    layers = params["adv_layers"]                     # [(W (in,out), b (out,)), ...]
    num_layers = len(layers)

    S, B = text.shape
    vocab, E = emb_table.shape
    O = layers[-1][0].shape[1]

    # ---- pad vocab to a lane-dense multiple of 128 (contraction dim of pooling matmul) ----
    Vp = _round_up(vocab, 128)
    table_p = jnp.zeros((Vp, E), jnp.float32).at[:vocab, :].set(emb_table.astype(jnp.float32))

    # ---- zero-pad adversary widths to multiples of 128 lanes (math unchanged) ----
    Ws, bs = [], []
    in_dim = E
    for (W, b) in layers:
        out_dim = W.shape[1]
        out_p = _round_up(out_dim, 128)
        Wp = jnp.zeros((in_dim, out_p), jnp.float32).at[: W.shape[0], :out_dim].set(W)
        bp = jnp.zeros((1, out_p), jnp.float32).at[:, :out_dim].set(b.reshape(1, -1))
        Ws.append(Wp)
        bs.append(bp)
        in_dim = out_p
    Op = Ws[-1].shape[1]

    # ---- batch tile: always a multiple of 8 sublanes, budgeted against the in-kernel ----
    # ---- working set (one-hot intermediate dominates; streamed buffers are tiny)     ----
    per_row_bytes = S * Vp * 4 + 2 * S * (4 + 4) + 2 * Op * 4
    max_tb = max(8, min(1024, (vmem_tile_budget_bytes // per_row_bytes) // 8 * 8))
    TB = min(max_tb, _round_up(B, 8))
    TB = max(8, _round_up(TB, 8))                     # fix: never a non-multiple of 8
    Bp = _round_up(B, TB)
    nb = Bp // TB
    if nb == 1 and TB >= 16:
        # keep >= 2 grid steps so the "parallel" axis can shard across v7x's 2 TensorCores
        TB = _round_up((TB + 1) // 2, 8)
        Bp = _round_up(B, TB)
        nb = Bp // TB

    # ---- frozen-encoder glue: only token ids + pooling weights go to the kernel ----
    text_bt = jnp.transpose(text.astype(jnp.int32))                    # (B, S) tiny transpose
    lengths = lengths.astype(jnp.int32)
    pos = jnp.arange(S, dtype=jnp.int32)[None, :]
    mask = (pos < lengths[:, None]).astype(jnp.float32)                # (B, S)
    w_pool = mask / lengths[:, None].astype(jnp.float32)               # mask & 1/len folded
    if Bp != B:
        text_bt = jnp.pad(text_bt, ((0, Bp - B), (0, 0)))              # pad rows -> token 0
        w_pool = jnp.pad(w_pool, ((0, Bp - B), (0, 0)))                # zero weight -> hidden 0

    # ---- specs ----
    weight_inputs, weight_specs = [], []
    for Wp, bp in zip(Ws, bs):
        weight_inputs += [Wp, bp]
        weight_specs += [
            pl.BlockSpec(Wp.shape, lambda i: (0, 0)),   # constant index -> stays resident
            pl.BlockSpec(bp.shape, lambda i: (0, 0)),
        ]
    # NOTE: resident operands could be single-buffered (pipeline_mode=pl.Buffered(1)) to
    # free VMEM for very wide adversaries; negligible at these sizes so left at default.

    in_specs = [
        pl.BlockSpec((TB, S), lambda i: (i, 0)),        # token ids (streamed / pipelined)
        pl.BlockSpec((TB, S), lambda i: (i, 0)),        # pooling weights
        pl.BlockSpec((Vp, E), lambda i: (0, 0)),        # embedding table (VMEM-resident)
    ] + weight_specs
    out_spec = pl.BlockSpec((TB, Op), lambda i: (i, 0))

    flops = (
        Bp * S * Vp                                     # one-hot compare/select
        + 2 * Bp * Vp * E                               # pooling matmul
        + sum(2 * Bp * Wp.shape[0] * Wp.shape[1] for Wp in Ws)
    )
    bytes_accessed = (
        Bp * S * (4 + 4) + Vp * E * 4 + Bp * Op * 4
        + sum(Wp.size * 4 + bp.size * 4 for Wp, bp in zip(Ws, bs))
    )

    out_padded = pl.pallas_call(
        _make_attacker_kernel(num_layers),
        out_shape=jax.ShapeDtypeStruct((Bp, Op), jnp.float32),
        grid=(nb,),
        in_specs=in_specs,
        out_specs=out_spec,
        compiler_params=pltpu.CompilerParams(
            dimension_semantics=("parallel",),
            vmem_limit_bytes=32 * 1024 * 1024,
        ),
        cost_estimate=pl.CostEstimate(
            flops=flops, transcendentals=0, bytes_accessed=bytes_accessed
        ),
    )(text_bt, w_pool, table_p, *weight_inputs)

    return out_padded[:B, :O]


def init_params(key, vocab, hid_dim, adv_number_of_layers, output_dim, pad_idx):
    """Frozen encoder table + DomainAdv layers (W stored (in, out): x @ W + b == x @ W_pt.T + b)."""
    emb_dim = 2 * hid_dim                             # adversary input_dim = 2 * hid_dim
    keys = jax.random.split(key, 1 + 2 * adv_number_of_layers)
    emb_table = 0.1 * jax.random.normal(keys[0], (vocab, emb_dim), jnp.float32)
    emb_table = emb_table.at[pad_idx].set(0.0)

    layers = []
    in_dim = emb_dim
    for i in range(adv_number_of_layers):
        out_dim = output_dim if (i == adv_number_of_layers - 1 and i != 0) else hid_dim
        W = 0.1 * jax.random.normal(keys[1 + 2 * i], (in_dim, out_dim), jnp.float32)
        b = 0.1 * jax.random.normal(keys[2 + 2 * i], (out_dim,), jnp.float32)
        layers.append((W, b))
        in_dim = out_dim
    return {"embedding": emb_table, "adv_layers": layers}


def reference_forward(text, lengths, params):
    """Pure-JAX reference mirroring the PyTorch eval-mode forward."""
    emb = jnp.take(params["embedding"], text, axis=0)                        # (S, B, E)
    S = text.shape[0]
    mask = (jnp.arange(S)[:, None] < lengths[None, :]).astype(jnp.float32)   # (S, B)
    hidden = (emb * mask[:, :, None]).sum(0) / lengths[:, None].astype(jnp.float32)
    x = hidden
    L = len(params["adv_layers"])
    for l, (W, b) in enumerate(params["adv_layers"]):
        x = x @ W + b
        if l != L - 1:
            x = jnp.maximum(x, 0.0)
    return x


if __name__ == "__main__":
    # model_params for Attacker
    model_params = dict(hidden_dim=32, adv_number_of_layers=3, adv_dropout=0.1, device="tpu")
    vocab, pad_idx, output_dim = 50, 0, 2
    seq_len, batch = 8, 2

    key = jax.random.PRNGKey(0)
    k_params, k_text = jax.random.split(key)
    params = init_params(
        k_params, vocab, model_params["hidden_dim"],
        model_params["adv_number_of_layers"], output_dim, pad_idx,
    )

    # text: (seq, batch) token ids in [1, vocab); positions beyond length set to pad_idx
    text = jax.random.randint(k_text, (seq_len, batch), 1, vocab, dtype=jnp.int32)
    lengths = jnp.array([5, 8], dtype=jnp.int32)
    pos = jnp.arange(seq_len, dtype=jnp.int32)[:, None]
    text = jnp.where(pos < lengths[None, :], text, pad_idx)

    out = attacker_forward(text, lengths, params)
    out = jax.block_until_ready(out)

    ref = reference_forward(text, lengths, params)
    assert out.shape == (batch, output_dim), out.shape
    assert jnp.allclose(out, ref, atol=1e-4, rtol=1e-4), float(jnp.max(jnp.abs(out - ref)))
    print("KERNEL_OK")
</pallas_src>

<mosaic_0001>
module attributes {stable_mosaic.version = 11 : i64} {
  func.func @kernel(%arg0: i32, %arg1: memref<8x8xi32, #tpu.memory_space<vmem>>, %arg2: memref<8x8xf32, #tpu.memory_space<vmem>>, %arg3: memref<128x64xf32, #tpu.memory_space<vmem>>, %arg4: memref<64x128xf32, #tpu.memory_space<vmem>>, %arg5: memref<1x128xf32, #tpu.memory_space<vmem>>, %arg6: memref<128x128xf32, #tpu.memory_space<vmem>>, %arg7: memref<1x128xf32, #tpu.memory_space<vmem>>, %arg8: memref<128x128xf32, #tpu.memory_space<vmem>>, %arg9: memref<1x128xf32, #tpu.memory_space<vmem>>, %arg10: memref<8x128xf32, #tpu.memory_space<vmem>>) attributes {dimension_semantics = [#tpu.dimension_semantics<parallel>], iteration_bounds = array<i64: 1>, scalar_prefetch = 0 : i64, scratch_operands = 0 : i64, tpu.core_type = #tpu.core_type<tc>, window_params = [{transform_indices = @transform_0, window_bounds = array<i64: 8, 8>}, {transform_indices = @transform_1, window_bounds = array<i64: 8, 8>}, {pipeline_mode = #tpu.pipeline_mode<synchronous>, transform_indices = @transform_2, window_bounds = array<i64: 128, 64>}, {pipeline_mode = #tpu.pipeline_mode<synchronous>, transform_indices = @transform_3, window_bounds = array<i64: 64, 128>}, {pipeline_mode = #tpu.pipeline_mode<synchronous>, transform_indices = @transform_4, window_bounds = array<i64: 1, 128>}, {pipeline_mode = #tpu.pipeline_mode<synchronous>, transform_indices = @transform_5, window_bounds = array<i64: 128, 128>}, {pipeline_mode = #tpu.pipeline_mode<synchronous>, transform_indices = @transform_6, window_bounds = array<i64: 1, 128>}, {pipeline_mode = #tpu.pipeline_mode<synchronous>, transform_indices = @transform_7, window_bounds = array<i64: 128, 128>}, {pipeline_mode = #tpu.pipeline_mode<synchronous>, transform_indices = @transform_8, window_bounds = array<i64: 1, 128>}, {transform_indices = @transform_9, window_bounds = array<i64: 8, 128>}]} {
    %c0 = arith.constant 0 : index
    %c0_0 = arith.constant 0 : index
    %0 = vector.load %arg1[%c0, %c0_0] : memref<8x8xi32, #tpu.memory_space<vmem>>, vector<8x8xi32>
    %c0_1 = arith.constant 0 : index
    %c0_2 = arith.constant 0 : index
    %1 = vector.load %arg2[%c0_1, %c0_2] : memref<8x8xf32, #tpu.memory_space<vmem>>, vector<8x8xf32>
    %2 = tpu.iota {dimensions = array<i32: 2>} : vector<8x8x128xi32>
    %3 = vector.shape_cast %0 : vector<8x8xi32> to vector<8x8x1xi32>
    %4 = vector.broadcast %3 : vector<8x8x1xi32> to vector<8x8x128xi32>
    %5 = arith.cmpi eq, %4, %2 : vector<8x8x128xi32>
    %6 = vector.shape_cast %1 : vector<8x8xf32> to vector<8x8x1xf32>
    %cst = arith.constant 0.000000e+00 : f32
    %7 = vector.shape_cast %6 : vector<8x8x1xf32> to vector<8x8x1xf32>
    %8 = vector.broadcast %7 : vector<8x8x1xf32> to vector<8x8x128xf32>
    %9 = vector.broadcast %cst : f32 to vector<8x8x128xf32>
    %10 = arith.select %5, %8, %9 : vector<8x8x128xi1>, vector<8x8x128xf32>
    %cst_3 = arith.constant dense<0.000000e+00> : vector<8x128xf32>
    %11 = vector.multi_reduction <add>, %10, %cst_3 [1] : vector<8x8x128xf32> to vector<8x128xf32>
    %c0_4 = arith.constant 0 : index
    %c0_5 = arith.constant 0 : index
    %12 = vector.load %arg3[%c0_4, %c0_5] : memref<128x64xf32, #tpu.memory_space<vmem>>, vector<128x64xf32>
    %cst_6 = arith.constant dense<0.000000e+00> : vector<8x64xf32>
    %13 = tpu.matmul %11, %12, %cst_6 {dimension_numbers = #tpu.dot_dimension_numbers<[1], [0], [0], [1], [0, 0, 1, 1], [], []>} : vector<8x128xf32>, vector<128x64xf32>, vector<8x64xf32> -> vector<8x64xf32>
    %c0_7 = arith.constant 0 : index
    %c0_8 = arith.constant 0 : index
    %14 = vector.load %arg4[%c0_7, %c0_8] : memref<64x128xf32, #tpu.memory_space<vmem>>, vector<64x128xf32>
    %c0_9 = arith.constant 0 : index
    %c0_10 = arith.constant 0 : index
    %15 = vector.load %arg5[%c0_9, %c0_10] : memref<1x128xf32, #tpu.memory_space<vmem>>, vector<1x128xf32>
    %cst_11 = arith.constant dense<0.000000e+00> : vector<8x128xf32>
    %16 = tpu.matmul %13, %14, %cst_11 {dimension_numbers = #tpu.dot_dimension_numbers<[1], [0], [0], [1], [0, 0, 1, 1], [], []>} : vector<8x64xf32>, vector<64x128xf32>, vector<8x128xf32> -> vector<8x128xf32>
    %17 = vector.broadcast %15 : vector<1x128xf32> to vector<8x128xf32>
    %18 = arith.addf %16, %17 : vector<8x128xf32>
    %cst_12 = arith.constant 0.000000e+00 : f32
    %19 = vector.broadcast %cst_12 : f32 to vector<8x128xf32>
    %20 = arith.maximumf %18, %19 : vector<8x128xf32>
    %c0_13 = arith.constant 0 : index
    %c0_14 = arith.constant 0 : index
    %21 = vector.load %arg6[%c0_13, %c0_14] : memref<128x128xf32, #tpu.memory_space<vmem>>, vector<128x128xf32>
    %c0_15 = arith.constant 0 : index
    %c0_16 = arith.constant 0 : index
    %22 = vector.load %arg7[%c0_15, %c0_16] : memref<1x128xf32, #tpu.memory_space<vmem>>, vector<1x128xf32>
    %cst_17 = arith.constant dense<0.000000e+00> : vector<8x128xf32>
    %23 = tpu.matmul %20, %21, %cst_17 {dimension_numbers = #tpu.dot_dimension_numbers<[1], [0], [0], [1], [0, 0, 1, 1], [], []>} : vector<8x128xf32>, vector<128x128xf32>, vector<8x128xf32> -> vector<8x128xf32>
    %24 = vector.broadcast %22 : vector<1x128xf32> to vector<8x128xf32>
    %25 = arith.addf %23, %24 : vector<8x128xf32>
    %cst_18 = arith.constant 0.000000e+00 : f32
    %26 = vector.broadcast %cst_18 : f32 to vector<8x128xf32>
    %27 = arith.maximumf %25, %26 : vector<8x128xf32>
    %c0_19 = arith.constant 0 : index
    %c0_20 = arith.constant 0 : index
    %28 = vector.load %arg8[%c0_19, %c0_20] : memref<128x128xf32, #tpu.memory_space<vmem>>, vector<128x128xf32>
    %c0_21 = arith.constant 0 : index
    %c0_22 = arith.constant 0 : index
    %29 = vector.load %arg9[%c0_21, %c0_22] : memref<1x128xf32, #tpu.memory_space<vmem>>, vector<1x128xf32>
    %cst_23 = arith.constant dense<0.000000e+00> : vector<8x128xf32>
    %30 = tpu.matmul %27, %28, %cst_23 {dimension_numbers = #tpu.dot_dimension_numbers<[1], [0], [0], [1], [0, 0, 1, 1], [], []>} : vector<8x128xf32>, vector<128x128xf32>, vector<8x128xf32> -> vector<8x128xf32>
    %31 = vector.broadcast %29 : vector<1x128xf32> to vector<8x128xf32>
    %32 = arith.addf %30, %31 : vector<8x128xf32>
    %c0_24 = arith.constant 0 : index
    %c0_25 = arith.constant 0 : index
    %33 = vector.load %arg10[%c0_24, %c0_25] : memref<8x128xf32, #tpu.memory_space<vmem>>, vector<8x128xf32>
    tpu.vector_store %arg10[%c0_24, %c0_25], %32 {strides = array<i32>} : memref<8x128xf32, #tpu.memory_space<vmem>>, vector<8x128xf32>,
    return
  }
  func.func @transform_0(%arg0: i32) -> (i32, i32) {
    %c0_i32 = arith.constant 0 : i32
    %c0_i32_0 = arith.constant 0 : i32
    return %arg0, %c0_i32 : i32, i32
  }
  func.func @transform_1(%arg0: i32) -> (i32, i32) {
    %c0_i32 = arith.constant 0 : i32
    %c0_i32_0 = arith.constant 0 : i32
    return %arg0, %c0_i32 : i32, i32
  }
  func.func @transform_2(%arg0: i32) -> (i32, i32) {
    %c0_i32 = arith.constant 0 : i32
    %c0_i32_0 = arith.constant 0 : i32
    %c0_i32_1 = arith.constant 0 : i32
    return %c0_i32, %c0_i32_0 : i32, i32
  }
  func.func @transform_3(%arg0: i32) -> (i32, i32) {
    %c0_i32 = arith.constant 0 : i32
    %c0_i32_0 = arith.constant 0 : i32
    %c0_i32_1 = arith.constant 0 : i32
    return %c0_i32, %c0_i32_0 : i32, i32
  }
  func.func @transform_4(%arg0: i32) -> (i32, i32) {
    %c0_i32 = arith.constant 0 : i32
    %c0_i32_0 = arith.constant 0 : i32
    %c0_i32_1 = arith.constant 0 : i32
    return %c0_i32, %c0_i32_0 : i32, i32
  }
  func.func @transform_5(%arg0: i32) -> (i32, i32) {
    %c0_i32 = arith.constant 0 : i32
    %c0_i32_0 = arith.constant 0 : i32
    %c0_i32_1 = arith.constant 0 : i32
    return %c0_i32, %c0_i32_0 : i32, i32
  }
  func.func @transform_6(%arg0: i32) -> (i32, i32) {
    %c0_i32 = arith.constant 0 : i32
    %c0_i32_0 = arith.constant 0 : i32
    %c0_i32_1 = arith.constant 0 : i32
    return %c0_i32, %c0_i32_0 : i32, i32
  }
  func.func @transform_7(%arg0: i32) -> (i32, i32) {
    %c0_i32 = arith.constant 0 : i32
    %c0_i32_0 = arith.constant 0 : i32
    %c0_i32_1 = arith.constant 0 : i32
    return %c0_i32, %c0_i32_0 : i32, i32
  }
  func.func @transform_8(%arg0: i32) -> (i32, i32) {
    %c0_i32 = arith.constant 0 : i32
    %c0_i32_0 = arith.constant 0 : i32
    %c0_i32_1 = arith.constant 0 : i32
    return %c0_i32, %c0_i32_0 : i32, i32
  }
  func.func @transform_9(%arg0: i32) -> (i32, i32) {
    %c0_i32 = arith.constant 0 : i32
    %c0_i32_0 = arith.constant 0 : i32
    return %arg0, %c0_i32 : i32, i32
  }
}

</mosaic_0001>

<llo_original>
// kernel: tpu_custom_call.1
$region0: #{tpu_custom_call.1}
  #allocation0 [shape = 'u32[]', space=smem, size = 0x4, offset = 0x4, fixed_abs, tag = 'smem constant byte address 0x4 - core index']
  #allocation1 [shape = 'u32[144,128]{1,0:T(1,128)}', space=vmem, size = 0x12000, scoped, tag = 'internal scratch']
  %s0 = inlined_call_operand.vmem [shape: s32[8,8], index: 0, kind: input, shape index: {}]
  %s1 = inlined_call_operand.vmem [shape: f32[8,8], index: 1, kind: input, shape index: {}]
  %s2 = inlined_call_operand.vmem [shape: f32[128,64], index: 2, kind: input, shape index: {}]
  %s3 = inlined_call_operand.vmem [shape: f32[64,128], index: 3, kind: input, shape index: {}]
  %s4 = inlined_call_operand.vmem [shape: f32[1,128], index: 4, kind: input, shape index: {}]
  %s5 = inlined_call_operand.vmem [shape: f32[128,128], index: 5, kind: input, shape index: {}]
  %s6 = inlined_call_operand.vmem [shape: f32[1,128], index: 6, kind: input, shape index: {}]
  %s7 = inlined_call_operand.hbm [shape: f32[128,128], index: 7, kind: input, shape index: {}]
  %s8 = inlined_call_operand.vmem [shape: f32[1,128], index: 8, kind: input, shape index: {}]
  %s9 = inlined_call_operand.hbm [shape: f32[8,128], index: 9, kind: output, shape index: {}]
  %s10 = sld [smem:[#allocation0]]
  $region50: #{tpu_custom_call.1} parent=0
    _
  %s12 = ssub.s32 1, %s10
  %s13 = scalar_select 0, %s12, %s10
  $region1: #{tpu_custom_call.1} parent=0
    #allocation2 [shape = 'u8[65536]{0}', space=vmem, size = 0x10000, scoped, tag = 'input window, operand 7, single buffered']
    #allocation3 [shape = 's32[1]{0}', space=sflag, size = 0x4, scoped, tag = 'scoped memory for tpu_custom_call.1']
    #allocation4 [shape = 's32[1]{0}', space=sflag, size = 0x4, scoped, tag = 'scoped memory for tpu_custom_call.1']
    #allocation5 [shape = 'u8[4096]{0}', space=vmem, size = 0x1000, scoped, tag = 'output window, operand 0, single buffered']
    %14 = vsyncpa [#allocation3], 0
    %15 = vsyncpa [#allocation4], 0
    // Predicated region
    $region2: #{tpu_custom_call.1} parent=1 // pred_check
      _
    $region3: #{tpu_custom_call.1} parent=1 // pred_check_branch
      %17 = sbr.rel (0) target = $region5
    $region4: #{tpu_custom_call.1} parent=1 // pred_region
      _
    $region5: #{tpu_custom_call.1} parent=1 // pred_fallthru
      _
    // Predicated region
    $region6: #{tpu_custom_call.1} parent=1 // pred_check
      _
    $region7: #{tpu_custom_call.1} parent=1 // pred_check_branch
      %19 = sbr.rel (0) target = $region9
    $region8: #{tpu_custom_call.1} parent=1 // pred_region
      _
    $region9: #{tpu_custom_call.1} parent=1 // pred_fallthru
      _
    // Predicated region
    $region10: #{tpu_custom_call.1} parent=1 // pred_check
      _
    $region11: #{tpu_custom_call.1} parent=1 // pred_check_branch
      %21 = sbr.rel (0) target = $region13
    $region12: #{tpu_custom_call.1} parent=1 // pred_region
      _
    $region13: #{tpu_custom_call.1} parent=1 // pred_fallthru
      _
    // Predicated region
    $region14: #{tpu_custom_call.1} parent=1 // pred_check
      _
    $region15: #{tpu_custom_call.1} parent=1 // pred_check_branch
      %23 = sbr.rel (0) target = $region17
    $region16: #{tpu_custom_call.1} parent=1 // pred_region
      _
    $region17: #{tpu_custom_call.1} parent=1 // pred_fallthru
      _
    // Predicated region
    $region18: #{tpu_custom_call.1} parent=1 // pred_check
      _
    $region19: #{tpu_custom_call.1} parent=1 // pred_check_branch
      %25 = sbr.rel (0) target = $region21
    $region20: #{tpu_custom_call.1} parent=1 // pred_region
      _
    $region21: #{tpu_custom_call.1} parent=1 // pred_fallthru
      _
    // Predicated region
    $region22: #{tpu_custom_call.1} parent=1 // pred_check
      _
    $region23: #{tpu_custom_call.1} parent=1 // pred_check_branch
      %27 = sbr.rel (0) target = $region25
    $region24: #{tpu_custom_call.1} parent=1 // pred_region
      _
    $region25: #{tpu_custom_call.1} parent=1 // pred_fallthru
      _
    // Predicated region
    $region26: #{tpu_custom_call.1} parent=1 // pred_check
      _
    $region27: #{tpu_custom_call.1} parent=1 // pred_check_branch
      %29 = sbr.rel (0) target = $region29
    $region28: #{tpu_custom_call.1} parent=1 // pred_region
      _
    $region29: #{tpu_custom_call.1} parent=1 // pred_fallthru
      _
    // Predicated region
    $region30: #{tpu_custom_call.1} parent=1 // pred_check
      _
    $region31: #{tpu_custom_call.1} parent=1 // pred_check_branch
      %31 = sbr.rel (0) target = $region33
    $region32: #{tpu_custom_call.1} parent=1 // pred_region
      %s33 = ssub.s32 2048, 2048
      %34 = vsyncadd [#allocation3], %s33
      %s35 = sshll.u32 [#allocation2], 4
      %s36 = int_to_ptr.vmem [resolvable:$true] %s35
      %41 = dma.hbm_to_vmem [thread:$0]  %s7, 2048, %s36, [#allocation3], 128, 128, 8
    $region33: #{tpu_custom_call.1} parent=1 // pred_fallthru
      _
    // Predicated region
    $region34: #{tpu_custom_call.1} parent=1 // pred_check
      _
    $region35: #{tpu_custom_call.1} parent=1 // pred_check_branch
      %43 = sbr.rel (0) target = $region37
    $region36: #{tpu_custom_call.1} parent=1 // pred_region
      _
    $region37: #{tpu_custom_call.1} parent=1 // pred_fallthru
      _
    // Predicated region
    $region38: #{tpu_custom_call.1} parent=1 // pred_check
      _
    $region39: #{tpu_custom_call.1} parent=1 // pred_check_branch
      %45 = sbr.rel (0) target = $region41
    $region40: #{tpu_custom_call.1} parent=1 // pred_region
      %46 = dma.done [#allocation3], 2048
    $region41: #{tpu_custom_call.1} parent=1 // pred_fallthru
      _
    %v47 = vld [vmem:[%s0] sm:$0xff]
    %v48 = vld [vmem:[%s1] sm:$0xff]
    %v49 = vlaneseq
    %v50 = vand.u32 %v49, 127
    %v51 = vlaneseq
    %v52 = vshrl.u32 %v51, 7
    %v53 = vsub.s32 0, %v52
    %v54 = vrot.slane %v47, %v53
    %56 = vbcast.lane.b32.xlu0 %v54, 256
    %v57 = vpop.permute.xlu0 %56
    %v58 = vlaneseq
    %v59 = vshrl.u32 %v58, 7
    %v60 = vsub.s32 1, %v59
    %v61 = vrot.slane %v47, %v60
    %63 = vbcast.lane.b32.xlu0 %v61, 256
    %v64 = vpop.permute.xlu0 %63
    %v65 = vlaneseq
    %v66 = vshrl.u32 %v65, 7
    %v67 = vsub.s32 2, %v66
    %v68 = vrot.slane %v47, %v67
    %70 = vbcast.lane.b32.xlu0 %v68, 256
    %v71 = vpop.permute.xlu0 %70
    %v72 = vlaneseq
    %v73 = vshrl.u32 %v72, 7
    %v74 = vsub.s32 3, %v73
    %v75 = vrot.slane %v47, %v74
    %77 = vbcast.lane.b32.xlu0 %v75, 256
    %v78 = vpop.permute.xlu0 %77
    %v79 = vlaneseq
    %v80 = vshrl.u32 %v79, 7
    %v81 = vsub.s32 4, %v80
    %v82 = vrot.slane %v47, %v81
    %84 = vbcast.lane.b32.xlu0 %v82, 256
    %v85 = vpop.permute.xlu0 %84
    %v86 = vlaneseq
    %v87 = vshrl.u32 %v86, 7
    %v88 = vsub.s32 5, %v87
    %v89 = vrot.slane %v47, %v88
    %91 = vbcast.lane.b32.xlu0 %v89, 256
    %v92 = vpop.permute.xlu0 %91
    %v93 = vlaneseq
    %v94 = vshrl.u32 %v93, 7
    %v95 = vsub.s32 6, %v94
    %v96 = vrot.slane %v47, %v95
    %98 = vbcast.lane.b32.xlu0 %v96, 256
    %v99 = vpop.permute.xlu0 %98
    %v100 = vlaneseq
    %v101 = vshrl.u32 %v100, 7
    %v102 = vsub.s32 7, %v101
    %v103 = vrot.slane %v47, %v102
    %105 = vbcast.lane.b32.xlu0 %v103, 256
    %v106 = vpop.permute.xlu0 %105
    %vm107 = vcmp.eq.s32.totalorder %v57, %v50
    %vm108 = vcmp.eq.s32.totalorder %v64, %v50
    %vm109 = vcmp.eq.s32.totalorder %v71, %v50
    %vm110 = vcmp.eq.s32.totalorder %v78, %v50
    %vm111 = vcmp.eq.s32.totalorder %v85, %v50
    %vm112 = vcmp.eq.s32.totalorder %v92, %v50
    %vm113 = vcmp.eq.s32.totalorder %v99, %v50
    %vm114 = vcmp.eq.s32.totalorder %v106, %v50
    %v115 = vlaneseq
    %v116 = vshrl.u32 %v115, 7
    %v117 = vsub.s32 0, %v116
    %v118 = vrot.slane %v48, %v117
    %120 = vbcast.lane.b32.xlu0 %v118, 256
    %v121 = vpop.permute.xlu0 %120
    %v122 = vlaneseq
    %v123 = vshrl.u32 %v122, 7
    %v124 = vsub.s32 1, %v123
    %v125 = vrot.slane %v48, %v124
    %127 = vbcast.lane.b32.xlu0 %v125, 256
    %v128 = vpop.permute.xlu0 %127
    %v129 = vlaneseq
    %v130 = vshrl.u32 %v129, 7
    %v131 = vsub.s32 2, %v130
    %v132 = vrot.slane %v48, %v131
    %134 = vbcast.lane.b32.xlu0 %v132, 256
    %v135 = vpop.permute.xlu0 %134
    %v136 = vlaneseq
    %v137 = vshrl.u32 %v136, 7
    %v138 = vsub.s32 3, %v137
    %v139 = vrot.slane %v48, %v138
    %141 = vbcast.lane.b32.xlu0 %v139, 256
    %v142 = vpop.permute.xlu0 %141
    %v143 = vlaneseq
    %v144 = vshrl.u32 %v143, 7
    %v145 = vsub.s32 4, %v144
    %v146 = vrot.slane %v48, %v145
    %148 = vbcast.lane.b32.xlu0 %v146, 256
    %v149 = vpop.permute.xlu0 %148
    %v150 = vlaneseq
    %v151 = vshrl.u32 %v150, 7
    %v152 = vsub.s32 5, %v151
    %v153 = vrot.slane %v48, %v152
    %155 = vbcast.lane.b32.xlu0 %v153, 256
    %v156 = vpop.permute.xlu0 %155
    %v157 = vlaneseq
    %v158 = vshrl.u32 %v157, 7
    %v159 = vsub.s32 6, %v158
    %v160 = vrot.slane %v48, %v159
    %162 = vbcast.lane.b32.xlu0 %v160, 256
    %v163 = vpop.permute.xlu0 %162
    %v164 = vlaneseq
    %v165 = vshrl.u32 %v164, 7
    %v166 = vsub.s32 7, %v165
    %v167 = vrot.slane %v48, %v166
    %169 = vbcast.lane.b32.xlu0 %v167, 256
    %v170 = vpop.permute.xlu0 %169
    %v171 = vsel %vm107, %v121, 0.0
    %v172 = vsel %vm108, %v128, 0.0
    %v173 = vsel %vm109, %v135, 0.0
    %v174 = vsel %vm110, %v142, 0.0
    %v175 = vsel %vm111, %v149, 0.0
    %v176 = vsel %vm112, %v156, 0.0
    %v177 = vsel %vm113, %v163, 0.0
    %v178 = vsel %vm114, %v170, 0.0
    %v179 = vrot.slane %v171, 4
    %v180 = vadd.f32 %v171, %v179
    %v181 = vrot.slane %v180, 2
    %v182 = vadd.f32 %v180, %v181
    %v183 = vrot.slane %v182, 1
    %v184 = vadd.f32 %v182, %v183
    %v185 = vrot.slane %v172, 4
    %v186 = vadd.f32 %v172, %v185
    %v187 = vrot.slane %v186, 2
    %v188 = vadd.f32 %v186, %v187
    %v189 = vrot.slane %v188, 1
    %v190 = vadd.f32 %v188, %v189
    %v191 = vrot.slane %v173, 4
    %v192 = vadd.f32 %v173, %v191
    %v193 = vrot.slane %v192, 2
    %v194 = vadd.f32 %v192, %v193
    %v195 = vrot.slane %v194, 1
    %v196 = vadd.f32 %v194, %v195
    %v197 = vrot.slane %v174, 4
    %v198 = vadd.f32 %v174, %v197
    %v199 = vrot.slane %v198, 2
    %v200 = vadd.f32 %v198, %v199
    %v201 = vrot.slane %v200, 1
    %v202 = vadd.f32 %v200, %v201
    %v203 = vrot.slane %v175, 4
    %v204 = vadd.f32 %v175, %v203
    %v205 = vrot.slane %v204, 2
    %v206 = vadd.f32 %v204, %v205
    %v207 = vrot.slane %v206, 1
    %v208 = vadd.f32 %v206, %v207
    %v209 = vrot.slane %v176, 4
    %v210 = vadd.f32 %v176, %v209
    %v211 = vrot.slane %v210, 2
    %v212 = vadd.f32 %v210, %v211
    %v213 = vrot.slane %v212, 1
    %v214 = vadd.f32 %v212, %v213
    %v215 = vrot.slane %v177, 4
    %v216 = vadd.f32 %v177, %v215
    %v217 = vrot.slane %v216, 2
    %v218 = vadd.f32 %v216, %v217
    %v219 = vrot.slane %v218, 1
    %v220 = vadd.f32 %v218, %v219
    %v221 = vrot.slane %v178, 4
    %v222 = vadd.f32 %v178, %v221
    %v223 = vrot.slane %v222, 2
    %v224 = vadd.f32 %v222, %v223
    %v225 = vrot.slane %v224, 1
    %v226 = vadd.f32 %v224, %v225
    %v227 = vld [vmem:[%s2] sm:$0xff]
    %v228 = vld [vmem:[%s2 + $0x8] sm:$0xff]
    %v229 = vld [vmem:[%s2 + $0x10] sm:$0xff]
    %v230 = vld [vmem:[%s2 + $0x18] sm:$0xff]
    %v231 = vld [vmem:[%s2 + $0x20] sm:$0xff]
    %v232 = vld [vmem:[%s2 + $0x28] sm:$0xff]
    %v233 = vld [vmem:[%s2 + $0x30] sm:$0xff]
    %v234 = vld [vmem:[%s2 + $0x38] sm:$0xff]
    %v235 = vld [vmem:[%s2 + $0x40] sm:$0xff]
    %v236 = vld [vmem:[%s2 + $0x48] sm:$0xff]
    %v237 = vld [vmem:[%s2 + $0x50] sm:$0xff]
    %v238 = vld [vmem:[%s2 + $0x58] sm:$0xff]
    %v239 = vld [vmem:[%s2 + $0x60] sm:$0xff]
    %v240 = vld [vmem:[%s2 + $0x68] sm:$0xff]
    %v241 = vld [vmem:[%s2 + $0x70] sm:$0xff]
    %v242 = vld [vmem:[%s2 + $0x78] sm:$0xff]
    %vm251 = vcmask 1041409
    %v252 = vsel %vm251, %v190, %v184
    %vm253 = vcmask 1042434
    %v254 = vsel %vm253, %v196, %v252
    %vm255 = vcmask 1043459
    %v256 = vsel %vm255, %v202, %v254
    %vm257 = vcmask 1044484
    %v258 = vsel %vm257, %v208, %v256
    %vm259 = vcmask 1045509
    %v260 = vsel %vm259, %v214, %v258
    %vm261 = vcmask 1046534
    %v262 = vsel %vm261, %v220, %v260
    %vm263 = vcmask 1047559
    %v264 = vsel %vm263, %v226, %v262
    %266 = vmatprep.subr.mxu0 0.0
    %267 = vmatpush1.msra.mxu0 %v227
    %268 = vmatprep.subr.mxu0 0.0
    %269 = vmatpush1.msra.mxu0 %v228
    %270 = vmatprep.subr.mxu0 0.0
    %271 = vmatpush1.msra.mxu0 %v229
    %272 = vmatprep.subr.mxu0 0.0
    %273 = vmatpush1.msra.mxu0 %v230
    %274 = vmatprep.subr.mxu0 0.0
    %275 = vmatpush1.msra.mxu0 %v231
    %276 = vmatprep.subr.mxu0 0.0
    %277 = vmatpush1.msra.mxu0 %v232
    %278 = vmatprep.subr.mxu0 0.0
    %279 = vmatpush1.msra.mxu0 %v233
    %280 = vmatprep.subr.mxu0 0.0
    %281 = vmatpush1.msra.mxu0 %v234
    %282 = vmatprep.subr.mxu0 0.0
    %283 = vmatpush1.msra.mxu0 %v235
    %284 = vmatprep.subr.mxu0 0.0
    %285 = vmatpush1.msra.mxu0 %v236
    %286 = vmatprep.subr.mxu0 0.0
    %287 = vmatpush1.msra.mxu0 %v237
    %288 = vmatprep.subr.mxu0 0.0
    %289 = vmatpush1.msra.mxu0 %v238
    %290 = vmatprep.subr.mxu0 0.0
    %291 = vmatpush1.msra.mxu0 %v239
    %292 = vmatprep.subr.mxu0 0.0
    %293 = vmatpush1.msra.mxu0 %v240
    %294 = vmatprep.subr.mxu0 0.0
    %295 = vmatpush1.msra.mxu0 %v241
    %296 = vmatprep.subr.mxu0 0.0
    %297 = vmatpush1.msra.mxu0 %v242
    %298 = vmatprep.subr.mxu0 0.0
    %299 = vmatpush1.msra.mxu0 0.0
    %300 = vmatprep.subr.mxu0 0.0
    %301 = vmatpush1.msra.mxu0 0.0
    %302 = vmatprep.subr.mxu0 0.0
    %303 = vmatpush1.msra.mxu0 0.0
    %304 = vmatprep.subr.mxu0 0.0
    %305 = vmatpush1.msra.mxu0 0.0
    %306 = vmatprep.subr.mxu0 0.0
    %307 = vmatpush1.msra.mxu0 0.0
    %308 = vmatprep.subr.mxu0 0.0
    %309 = vmatpush1.msra.mxu0 0.0
    %310 = vmatprep.subr.mxu0 0.0
    %311 = vmatpush1.msra.mxu0 0.0
    %312 = vmatprep.subr.mxu0 0.0
    %313 = vmatpush1.msra.mxu0 0.0
    %314 = vmatprep.subr.mxu0 0.0
    %315 = vmatpush1.msra.mxu0 0.0
    %316 = vmatprep.subr.mxu0 0.0
    %317 = vmatpush1.msra.mxu0 0.0
    %318 = vmatprep.subr.mxu0 0.0
    %319 = vmatpush1.msra.mxu0 0.0
    %320 = vmatprep.subr.mxu0 0.0
    %321 = vmatpush1.msra.mxu0 0.0
    %322 = vmatprep.subr.mxu0 0.0
    %323 = vmatpush1.msra.mxu0 0.0
    %324 = vmatprep.subr.mxu0 0.0
    %325 = vmatpush1.msra.mxu0 0.0
    %326 = vmatprep.subr.mxu0 0.0
    %327 = vmatpush1.msra.mxu0 0.0
    %328 = vmatprep.subr.mxu0 0.0
    %329 = vmatpush1.msra.mxu0 0.0
    %330 = vmatprep.mubr.f32.mxu0 0.0
    %331 = vmatmul.mubr.f32.gmra.mrb[0].mxu0 %v264
    %v332 = vpop.f32.mrb[0].mxu0
    %v333 = vadd.f32 0.0, %v332
    %v334 = vpop.f32.mrb[0].mxu0
    %335 = vdwg.mxu0
    %v336 = vld [vmem:[%s3] sm:$0xff]
    %v337 = vld [vmem:[%s3 + $0x8] sm:$0xff]
    %v338 = vld [vmem:[%s3 + $0x10] sm:$0xff]
    %v339 = vld [vmem:[%s3 + $0x18] sm:$0xff]
    %v340 = vld [vmem:[%s3 + $0x20] sm:$0xff]
    %v341 = vld [vmem:[%s3 + $0x28] sm:$0xff]
    %v342 = vld [vmem:[%s3 + $0x30] sm:$0xff]
    %v343 = vld [vmem:[%s3 + $0x38] sm:$0xff]
    %v344 = vld [vmem:[%s4] sm:$0x1]
    %v346 = vlaneseq
    %v347 = vshrl.u32 %v346, 7
    %v348 = vsub.s32 0, %v347
    %v349 = vrot.slane %v344, %v348
    %vm351 = vcmask 523264
    %v353 = vsel %vm351, %v333, 0
    %355 = vmatprep.subr.mxu0 0.0
    %356 = vmatpush1.msra.mxu0 %v336
    %357 = vmatprep.subr.mxu0 0.0
    %358 = vmatpush1.msra.mxu0 %v337
    %359 = vmatprep.subr.mxu0 0.0
    %360 = vmatpush1.msra.mxu0 %v338
    %361 = vmatprep.subr.mxu0 0.0
    %362 = vmatpush1.msra.mxu0 %v339
    %363 = vmatprep.subr.mxu0 0.0
    %364 = vmatpush1.msra.mxu0 %v340
    %365 = vmatprep.subr.mxu0 0.0
    %366 = vmatpush1.msra.mxu0 %v341
    %367 = vmatprep.subr.mxu0 0.0
    %368 = vmatpush1.msra.mxu0 %v342
    %369 = vmatprep.subr.mxu0 0.0
    %370 = vmatpush1.msra.mxu0 %v343
    %371 = vmatprep.subr.mxu0 0.0
    %372 = vmatpush1.msra.mxu0 0.0
    %373 = vmatprep.subr.mxu0 0.0
    %374 = vmatpush1.msra.mxu0 0.0
    %375 = vmatprep.subr.mxu0 0.0
    %376 = vmatpush1.msra.mxu0 0.0
    %377 = vmatprep.subr.mxu0 0.0
    %378 = vmatpush1.msra.mxu0 0.0
    %379 = vmatprep.subr.mxu0 0.0
    %380 = vmatpush1.msra.mxu0 0.0
    %381 = vmatprep.subr.mxu0 0.0
    %382 = vmatpush1.msra.mxu0 0.0
    %383 = vmatprep.subr.mxu0 0.0
    %384 = vmatpush1.msra.mxu0 0.0
    %385 = vmatprep.subr.mxu0 0.0
    %386 = vmatpush1.msra.mxu0 0.0
    %387 = vmatprep.subr.mxu0 0.0
    %388 = vmatpush1.msra.mxu0 0.0
    %389 = vmatprep.subr.mxu0 0.0
    %390 = vmatpush1.msra.mxu0 0.0
    %391 = vmatprep.subr.mxu0 0.0
    %392 = vmatpush1.msra.mxu0 0.0
    %393 = vmatprep.subr.mxu0 0.0
    %394 = vmatpush1.msra.mxu0 0.0
    %395 = vmatprep.subr.mxu0 0.0
    %396 = vmatpush1.msra.mxu0 0.0
    %397 = vmatprep.subr.mxu0 0.0
    %398 = vmatpush1.msra.mxu0 0.0
    %399 = vmatprep.subr.mxu0 0.0
    %400 = vmatpush1.msra.mxu0 0.0
    %401 = vmatprep.subr.mxu0 0.0
    %402 = vmatpush1.msra.mxu0 0.0
    %403 = vmatprep.subr.mxu0 0.0
    %404 = vmatpush1.msra.mxu0 0.0
    %405 = vmatprep.subr.mxu0 0.0
    %406 = vmatpush1.msra.mxu0 0.0
    %407 = vmatprep.subr.mxu0 0.0
    %408 = vmatpush1.msra.mxu0 0.0
    %409 = vmatprep.subr.mxu0 0.0
    %410 = vmatpush1.msra.mxu0 0.0
    %411 = vmatprep.subr.mxu0 0.0
    %412 = vmatpush1.msra.mxu0 0.0
    %413 = vmatprep.subr.mxu0 0.0
    %414 = vmatpush1.msra.mxu0 0.0
    %415 = vmatprep.subr.mxu0 0.0
    %416 = vmatpush1.msra.mxu0 0.0
    %417 = vmatprep.subr.mxu0 0.0
    %418 = vmatpush1.msra.mxu0 0.0
    %419 = vmatprep.mubr.f32.mxu0 0.0
    %420 = vmatmul.mubr.f32.gmra.mrb[0].mxu0 %v353
    %v421 = vpop.f32.mrb[0].mxu0
    %v422 = vadd.f32 %v349, %v421
    %v423 = vpop.f32.mrb[0].mxu0
    %424 = vdwg.mxu0
    %v425 = vmax.f32 %v422, 0.0
    %v426 = vld [vmem:[%s5] sm:$0xff]
    %v427 = vld [vmem:[%s5 + $0x8] sm:$0xff]
    %v428 = vld [vmem:[%s5 + $0x10] sm:$0xff]
    %v429 = vld [vmem:[%s5 + $0x18] sm:$0xff]
    %v430 = vld [vmem:[%s5 + $0x20] sm:$0xff]
    %v431 = vld [vmem:[%s5 + $0x28] sm:$0xff]
    %v432 = vld [vmem:[%s5 + $0x30] sm:$0xff]
    %v433 = vld [vmem:[%s5 + $0x38] sm:$0xff]
    %v434 = vld [vmem:[%s5 + $0x40] sm:$0xff]
    %v435 = vld [vmem:[%s5 + $0x48] sm:$0xff]
    %v436 = vld [vmem:[%s5 + $0x50] sm:$0xff]
    %v437 = vld [vmem:[%s5 + $0x58] sm:$0xff]
    %v438 = vld [vmem:[%s5 + $0x60] sm:$0xff]
    %v439 = vld [vmem:[%s5 + $0x68] sm:$0xff]
    %v440 = vld [vmem:[%s5 + $0x70] sm:$0xff]
    %v441 = vld [vmem:[%s5 + $0x78] sm:$0xff]
    %v442 = vld [vmem:[%s6] sm:$0x1]
    %v444 = vlaneseq
    %v445 = vshrl.u32 %v444, 7
    %v446 = vsub.s32 0, %v445
    %v447 = vrot.slane %v442, %v446
    %449 = vmatprep.subr.mxu0 0.0
    %450 = vmatpush1.msra.mxu0 %v426
    %451 = vmatprep.subr.mxu0 0.0
    %452 = vmatpush1.msra.mxu0 %v427
    %453 = vmatprep.subr.mxu0 0.0
    %454 = vmatpush1.msra.mxu0 %v428
    %455 = vmatprep.subr.mxu0 0.0
    %456 = vmatpush1.msra.mxu0 %v429
    %457 = vmatprep.subr.mxu0 0.0
    %458 = vmatpush1.msra.mxu0 %v430
    %459 = vmatprep.subr.mxu0 0.0
    %460 = vmatpush1.msra.mxu0 %v431
    %461 = vmatprep.subr.mxu0 0.0
    %462 = vmatpush1.msra.mxu0 %v432
    %463 = vmatprep.subr.mxu0 0.0
    %464 = vmatpush1.msra.mxu0 %v433
    %465 = vmatprep.subr.mxu0 0.0
    %466 = vmatpush1.msra.mxu0 %v434
    %467 = vmatprep.subr.mxu0 0.0
    %468 = vmatpush1.msra.mxu0 %v435
    %469 = vmatprep.subr.mxu0 0.0
    %470 = vmatpush1.msra.mxu0 %v436
    %471 = vmatprep.subr.mxu0 0.0
    %472 = vmatpush1.msra.mxu0 %v437
    %473 = vmatprep.subr.mxu0 0.0
    %474 = vmatpush1.msra.mxu0 %v438
    %475 = vmatprep.subr.mxu0 0.0
    %476 = vmatpush1.msra.mxu0 %v439
    %477 = vmatprep.subr.mxu0 0.0
    %478 = vmatpush1.msra.mxu0 %v440
    %479 = vmatprep.subr.mxu0 0.0
    %480 = vmatpush1.msra.mxu0 %v441
    %481 = vmatprep.subr.mxu0 0.0
    %482 = vmatpush1.msra.mxu0 0.0
    %483 = vmatprep.subr.mxu0 0.0
    %484 = vmatpush1.msra.mxu0 0.0
    %485 = vmatprep.subr.mxu0 0.0
    %486 = vmatpush1.msra.mxu0 0.0
    %487 = vmatprep.subr.mxu0 0.0
    %488 = vmatpush1.msra.mxu0 0.0
    %489 = vmatprep.subr.mxu0 0.0
    %490 = vmatpush1.msra.mxu0 0.0
    %491 = vmatprep.subr.mxu0 0.0
    %492 = vmatpush1.msra.mxu0 0.0
    %493 = vmatprep.subr.mxu0 0.0
    %494 = vmatpush1.msra.mxu0 0.0
    %495 = vmatprep.subr.mxu0 0.0
    %496 = vmatpush1.msra.mxu0 0.0
    %497 = vmatprep.subr.mxu0 0.0
    %498 = vmatpush1.msra.mxu0 0.0
    %499 = vmatprep.subr.mxu0 0.0
    %500 = vmatpush1.msra.mxu0 0.0
    %501 = vmatprep.subr.mxu0 0.0
    %502 = vmatpush1.msra.mxu0 0.0
    %503 = vmatprep.subr.mxu0 0.0
    %504 = vmatpush1.msra.mxu0 0.0
    %505 = vmatprep.subr.mxu0 0.0
    %506 = vmatpush1.msra.mxu0 0.0
    %507 = vmatprep.subr.mxu0 0.0
    %508 = vmatpush1.msra.mxu0 0.0
    %509 = vmatprep.subr.mxu0 0.0
    %510 = vmatpush1.msra.mxu0 0.0
    %511 = vmatprep.subr.mxu0 0.0
    %512 = vmatpush1.msra.mxu0 0.0
    %513 = vmatprep.mubr.f32.mxu0 0.0
    %514 = vmatmul.mubr.f32.gmra.mrb[0].mxu0 %v425
    %v515 = vpop.f32.mrb[0].mxu0
    %v516 = vadd.f32 %v447, %v515
    %v517 = vpop.f32.mrb[0].mxu0
    %518 = vdwg.mxu0
    %v519 = vmax.f32 %v516, 0.0
    %v520 = vld [vmem:[#allocation2] sm:$0xff]
    %v521 = vld [vmem:[#allocation2 + $0x8] sm:$0xff]
    %v522 = vld [vmem:[#allocation2 + $0x10] sm:$0xff]
    %v523 = vld [vmem:[#allocation2 + $0x18] sm:$0xff]
    %v524 = vld [vmem:[#allocation2 + $0x20] sm:$0xff]
    %v525 = vld [vmem:[#allocation2 + $0x28] sm:$0xff]
    %v526 = vld [vmem:[#allocation2 + $0x30] sm:$0xff]
    %v527 = vld [vmem:[#allocation2 + $0x38] sm:$0xff]
    %v528 = vld [vmem:[#allocation2 + $0x40] sm:$0xff]
    %v529 = vld [vmem:[#allocation2 + $0x48] sm:$0xff]
    %v530 = vld [vmem:[#allocation2 + $0x50] sm:$0xff]
    %v531 = vld [vmem:[#allocation2 + $0x58] sm:$0xff]
    %v532 = vld [vmem:[#allocation2 + $0x60] sm:$0xff]
    %v533 = vld [vmem:[#allocation2 + $0x68] sm:$0xff]
    %v534 = vld [vmem:[#allocation2 + $0x70] sm:$0xff]
    %v535 = vld [vmem:[#allocation2 + $0x78] sm:$0xff]
    %v536 = vld [vmem:[%s8] sm:$0x1]
    %v538 = vlaneseq
    %v539 = vshrl.u32 %v538, 7
    %v540 = vsub.s32 0, %v539
    %v541 = vrot.slane %v536, %v540
    %543 = vmatprep.subr.mxu0 0.0
    %544 = vmatpush1.msra.mxu0 %v520
    %545 = vmatprep.subr.mxu0 0.0
    %546 = vmatpush1.msra.mxu0 %v521
    %547 = vmatprep.subr.mxu0 0.0
    %548 = vmatpush1.msra.mxu0 %v522
    %549 = vmatprep.subr.mxu0 0.0
    %550 = vmatpush1.msra.mxu0 %v523
    %551 = vmatprep.subr.mxu0 0.0
    %552 = vmatpush1.msra.mxu0 %v524
    %553 = vmatprep.subr.mxu0 0.0
    %554 = vmatpush1.msra.mxu0 %v525
    %555 = vmatprep.subr.mxu0 0.0
    %556 = vmatpush1.msra.mxu0 %v526
    %557 = vmatprep.subr.mxu0 0.0
    %558 = vmatpush1.msra.mxu0 %v527
    %559 = vmatprep.subr.mxu0 0.0
    %560 = vmatpush1.msra.mxu0 %v528
    %561 = vmatprep.subr.mxu0 0.0
    %562 = vmatpush1.msra.mxu0 %v529
    %563 = vmatprep.subr.mxu0 0.0
    %564 = vmatpush1.msra.mxu0 %v530
    %565 = vmatprep.subr.mxu0 0.0
    %566 = vmatpush1.msra.mxu0 %v531
    %567 = vmatprep.subr.mxu0 0.0
    %568 = vmatpush1.msra.mxu0 %v532
    %569 = vmatprep.subr.mxu0 0.0
    %570 = vmatpush1.msra.mxu0 %v533
    %571 = vmatprep.subr.mxu0 0.0
    %572 = vmatpush1.msra.mxu0 %v534
    %573 = vmatprep.subr.mxu0 0.0
    %574 = vmatpush1.msra.mxu0 %v535
    %575 = vmatprep.subr.mxu0 0.0
    %576 = vmatpush1.msra.mxu0 0.0
    %577 = vmatprep.subr.mxu0 0.0
    %578 = vmatpush1.msra.mxu0 0.0
    %579 = vmatprep.subr.mxu0 0.0
    %580 = vmatpush1.msra.mxu0 0.0
    %581 = vmatprep.subr.mxu0 0.0
    %582 = vmatpush1.msra.mxu0 0.0
    %583 = vmatprep.subr.mxu0 0.0
    %584 = vmatpush1.msra.mxu0 0.0
    %585 = vmatprep.subr.mxu0 0.0
    %586 = vmatpush1.msra.mxu0 0.0
    %587 = vmatprep.subr.mxu0 0.0
    %588 = vmatpush1.msra.mxu0 0.0
    %589 = vmatprep.subr.mxu0 0.0
    %590 = vmatpush1.msra.mxu0 0.0
    %591 = vmatprep.subr.mxu0 0.0
    %592 = vmatpush1.msra.mxu0 0.0
    %593 = vmatprep.subr.mxu0 0.0
    %594 = vmatpush1.msra.mxu0 0.0
    %595 = vmatprep.subr.mxu0 0.0
    %596 = vmatpush1.msra.mxu0 0.0
    %597 = vmatprep.subr.mxu0 0.0
    %598 = vmatpush1.msra.mxu0 0.0
    %599 = vmatprep.subr.mxu0 0.0
    %600 = vmatpush1.msra.mxu0 0.0
    %601 = vmatprep.subr.mxu0 0.0
    %602 = vmatpush1.msra.mxu0 0.0
    %603 = vmatprep.subr.mxu0 0.0
    %604 = vmatpush1.msra.mxu0 0.0
    %605 = vmatprep.subr.mxu0 0.0
    %606 = vmatpush1.msra.mxu0 0.0
    %607 = vmatprep.mubr.f32.mxu0 0.0
    %608 = vmatmul.mubr.f32.gmra.mrb[0].mxu0 %v519
    %v609 = vpop.f32.mrb[0].mxu0
    %v610 = vadd.f32 %v541, %v609
    %v611 = vpop.f32.mrb[0].mxu0
    %612 = vdwg.mxu0
    %613 = vst [vmem:[#allocation5] sm:$0xff] %v610
    // Predicated region
    $region42: #{tpu_custom_call.1} parent=1 // pred_check
      _
    $region43: #{tpu_custom_call.1} parent=1 // pred_check_branch
      %615 = sbr.rel (0) target = $region45
    $region44: #{tpu_custom_call.1} parent=1 // pred_region
      %s617 = ssub.s32 128, 128
      %618 = vsyncadd [#allocation4], %s617
      %s620 = sshll.u32 [#allocation5], 4
      %s621 = int_to_ptr.vmem [resolvable:$true] %s620
      %623 = dma.vmem_to_hbm [thread:$0]  %s621, 128, %s9, [#allocation4]
    $region45: #{tpu_custom_call.1} parent=1 // pred_fallthru
      _
    // Predicated region
    $region46: #{tpu_custom_call.1} parent=1 // pred_check
      _
    $region47: #{tpu_custom_call.1} parent=1 // pred_check_branch
      %625 = sbr.rel (0) target = $region49
    $region48: #{tpu_custom_call.1} parent=1 // pred_region
      %626 = dma.done [#allocation4], 128
    $region49: #{tpu_custom_call.1} parent=1 // pred_fallthru
      _
    %627 = vsyncpa [#allocation3], 1
    %628 = vsyncpa [#allocation4], 1

</llo_original>
